<compile_context>
chip_gen: v7x
topology: tpu7x:2x2x1
jax: 0.10.0
libtpu: 0.0.40
codegen_flags: <defaults>
</compile_context>

<pallas_src>
import math

import jax
import jax.numpy as jnp
from jax.experimental import pallas as pl
from jax.experimental.pallas import tpu as pltpu


def _round_up(x, m):
    return (x + m - 1) // m * m


def _pad2(a, rows, cols):
    pr, pc = rows - a.shape[0], cols - a.shape[1]
    return jnp.pad(a, ((0, pr), (0, pc))) if (pr or pc) else a


def _detect_tpu_generation():
    """Map the local device kind onto the {v5e, v6e, v7x} tuning buckets."""
    try:
        kind = jax.devices()[0].device_kind.lower()
    except Exception:
        return "v6e"
    if "v7" in kind or "tpu7" in kind:
        return "v7x"
    if "v6" in kind:
        return "v6e"
    if "v5" in kind or "v4" in kind or "v3" in kind:
        return "v5e"          # conservative: no bf16 VPU/EUP, 128-wide MXU
    return "v6e"


# Roofline-derived row-tile targets (arithmetic intensity vs. weight DMA ~ tm):
# crossover ~240 (v5e), ~650 (v6e), ~310 per-TC (v7x).
_TM_TARGET = {"v5e": 384, "v6e": 1024, "v7x": 512}


def _vmem_footprint(tm, tk, e_p, out_itemsize, use_scratch, wbuf=2):
    """Approximate resident VMEM bytes for one grid step (double-buffered)."""
    row = 2 * tm * e_p * 2 + 2 * tm * e_p * out_itemsize       # x (bf16) + out blocks
    if use_scratch:
        row += tm * e_p * 4                                     # f32 accumulator
    wts = wbuf * (e_p * tk * 2 + tk * e_p * 2)                  # W_fc / W_proj chunks
    bias = 2 * (8 * tk * 4 + 8 * e_p * 4)                       # (1, n) blocks pad to 8 sublanes
    return row + wts + bias


def _pick_tk(h_p, align, tk_target):
    """Largest multiple of `align` that divides h_p and is <= tk_target."""
    units = h_p // align
    best = 1
    for d in range(1, units + 1):
        if units % d == 0 and d * align <= tk_target:
            best = d
    return best * align


def _pick_tm(m, gen, tm_request, e_p, tk, out_itemsize, use_scratch, wbuf):
    target = max(16, tm_request if tm_request is not None else _TM_TARGET.get(gen, 512))
    n_tiles = max(1, -(-m // target))
    # v7x has 2 TensorCores per chip: ensure >= 2 parallel row tiles when M allows.
    if tm_request is None and gen == "v7x" and m > 16 and n_tiles < 2:
        n_tiles = 2
    tm = max(16, _round_up(-(-m // n_tiles), 16))               # 16: bf16 sublane packing
    budget = (48 << 20) if gen == "v7x" else (96 << 20)         # physical-VMEM headroom
    while tm > 16 and _vmem_footprint(tm, tk, e_p, out_itemsize, use_scratch, wbuf) > budget:
        tm = max(16, _round_up(tm // 2, 16))
    return tm


def prepare_mlp_params(w_fc, b_fc, w_proj, b_proj, *, generation=None, tk=512):
    """One-time weight prep (hoisted out of the per-call path): pad feature dims
    to the MXU-friendly multiple (128 on v5e, 256 on v6e/v7x) and cast the
    weight matrices to bf16.  Weight layout is (in_features, out_features)."""
    gen = generation if generation is not None else _detect_tpu_generation()
    E, H = w_fc.shape
    assert w_proj.shape == (H, E)
    b_fc = jnp.reshape(b_fc, (1, H)).astype(jnp.float32)
    b_proj = jnp.reshape(b_proj, (1, E)).astype(jnp.float32)

    align = 128 if gen == "v5e" else 256          # MXU: 4x128^2 (v5e) vs 2x256^2 (v6e/v7x)
    e_p = _round_up(E, align)
    h_p = _round_up(H, align)
    tk_target = 256 if (gen == "v7x" and e_p >= 2048) else tk
    tk_v = _pick_tk(h_p, align, tk_target)

    return dict(
        generation=gen, E=E, H=H, E_p=e_p, H_p=h_p, tk=tk_v,
        w_fc=_pad2(w_fc, e_p, h_p).astype(jnp.bfloat16),
        b_fc=_pad2(b_fc, 1, h_p),
        w_proj=_pad2(w_proj, h_p, e_p).astype(jnp.bfloat16),
        b_proj=_pad2(b_proj, 1, e_p),
    )


def _make_mlp_kernel(compute_dtype, fuse_acc_into_out):
    def kernel(x_ref, w_fc_ref, b_fc_ref, w_proj_ref, b_proj_ref, o_ref, *scratch):
        # Dropout: eval/inference mode -> identity.
        # TODO(synk): training-mode dropout via pltpu.prng_seed / prng_random_bits mask.
        k = pl.program_id(1)
        acc_ref = o_ref if fuse_acc_into_out else scratch[0]

        @pl.when(k == 0)
        def _():
            # Initialise the accumulator with the output bias -> no finalize add.
            acc_ref[...] = jnp.broadcast_to(
                b_proj_ref[...], acc_ref.shape).astype(acc_ref.dtype)

        # First linear, this hidden chunk: (tm, E_p) bf16 @ (E_p, tk) bf16 -> f32.
        h = jnp.dot(x_ref[...], w_fc_ref[...], preferred_element_type=jnp.float32)
        h = (h + b_fc_ref[...]).astype(compute_dtype)

        # GELU(approximate='tanh'): 0.5*h*(1+tanh(sqrt(2/pi)*(h+0.044715*h^3))).
        # bf16 on v6e/v7x (bf16 VPU+EUP), f32 on v5e.
        g = 0.5 * h * (1.0 + jnp.tanh(0.7978845608028654 * h * (1.0 + 0.044715 * h * h)))

        # Second linear contribution: (tm, tk) bf16 @ (tk, E_p) bf16 -> f32 accumulate.
        acc_ref[...] += jnp.dot(g.astype(jnp.bfloat16), w_proj_ref[...],
                                preferred_element_type=jnp.float32)

        if not fuse_acc_into_out:
            @pl.when(k == pl.num_programs(1) - 1)
            def _():
                o_ref[...] = acc_ref[...].astype(o_ref.dtype)

    return kernel


def mlp_pallas(x, params, *, out_dtype=None, tm=None, weight_buffers=2):
    """x: (M, n_embd).  `params` comes from prepare_mlp_params."""
    gen = params["generation"]
    E, H = params["E"], params["H"]
    e_p, h_p, tk = params["E_p"], params["H_p"], params["tk"]
    M = x.shape[0]
    assert x.shape == (M, E)

    out_dtype = jnp.dtype(out_dtype if out_dtype is not None else x.dtype)
    fuse_acc = out_dtype == jnp.dtype(jnp.float32)    # accumulate directly into o_ref
    compute_dtype = jnp.float32 if gen == "v5e" else jnp.bfloat16

    wbuf = max(2, weight_buffers)
    tm_v = _pick_tm(M, gen, tm, e_p, tk, out_dtype.itemsize, not fuse_acc, wbuf)
    m_p = _round_up(M, tm_v)
    x_p = _pad2(x, m_p, e_p).astype(jnp.bfloat16)

    grid = (m_p // tm_v, h_p // tk)
    n_row_tiles = grid[0]

    def wspec(shape, idx):
        # Optional extra buffering for the streamed weight chunks if their DMA
        # is still exposed after raising tm (off by default).
        if weight_buffers > 2:
            return pl.BlockSpec(shape, idx, pipeline_mode=pl.Buffered(weight_buffers))
        return pl.BlockSpec(shape, idx)

    in_specs = [
        pl.BlockSpec((tm_v, e_p), lambda i, k: (i, 0)),     # x row-tile (resident over k)
        wspec((e_p, tk), lambda i, k: (0, k)),              # W_fc hidden chunk
        pl.BlockSpec((1, tk), lambda i, k: (0, k)),         # b_fc chunk
        wspec((tk, e_p), lambda i, k: (k, 0)),              # W_proj hidden chunk
        pl.BlockSpec((1, e_p), lambda i, k: (0, 0)),        # b_proj
    ]
    out_spec = pl.BlockSpec((tm_v, e_p), lambda i, k: (i, 0))
    scratch = [] if fuse_acc else [pltpu.VMEM((tm_v, e_p), jnp.float32)]

    cost = pl.CostEstimate(
        flops=4 * m_p * e_p * h_p,                           # two matmuls, 2*M*E*H each
        transcendentals=m_p * h_p,                           # one tanh per hidden element
        bytes_accessed=(m_p * e_p * 2                                        # x (bf16)
                        + n_row_tiles * (e_p * h_p * 2 + h_p * e_p * 2)      # weights restreamed per row tile
                        + n_row_tiles * (h_p * 4 + e_p * 4)                  # biases
                        + m_p * e_p * out_dtype.itemsize),                   # output
    )

    footprint = _vmem_footprint(tm_v, tk, e_p, out_dtype.itemsize, not fuse_acc, wbuf)
    vmem_cap = (60 << 20) if gen == "v7x" else (110 << 20)
    vmem_limit = int(min(vmem_cap, max(footprint * 5 // 4 + (1 << 20), 16 << 20)))

    out_p = pl.pallas_call(
        _make_mlp_kernel(compute_dtype, fuse_acc),
        out_shape=jax.ShapeDtypeStruct((m_p, e_p), out_dtype),
        grid_spec=pltpu.PrefetchScalarGridSpec(
            num_scalar_prefetch=0,
            grid=grid,
            in_specs=in_specs,
            out_specs=out_spec,
            scratch_shapes=scratch,
        ),
        compiler_params=pltpu.CompilerParams(
            dimension_semantics=("parallel", "arbitrary"),
            vmem_limit_bytes=vmem_limit,
        ),
        cost_estimate=cost,
    )(x_p, params["w_fc"], params["b_fc"], params["w_proj"], params["b_proj"])

    return out_p[:M, :E]


def _reference_mlp(x, w_fc, b_fc, w_proj, b_proj, compute_dtype):
    """Pure-JAX reference matching the kernel numerics (bf16 MXU operands,
    f32 accumulation, GELU in compute_dtype)."""
    h = jnp.dot(x.astype(jnp.bfloat16), w_fc.astype(jnp.bfloat16),
                preferred_element_type=jnp.float32) + b_fc.reshape(1, -1)
    h = h.astype(compute_dtype)
    g = 0.5 * h * (1.0 + jnp.tanh(0.7978845608028654 * h * (1.0 + 0.044715 * h * h)))
    return jnp.dot(g.astype(jnp.bfloat16), w_proj.astype(jnp.bfloat16),
                   preferred_element_type=jnp.float32) + b_proj.reshape(1, -1)


def _reference_mlp_f32(x, w_fc, b_fc, w_proj, b_proj):
    """Full-f32 reference of the torch module's eval-mode forward."""
    h = x @ w_fc + b_fc.reshape(1, -1)
    g = 0.5 * h * (1.0 + jnp.tanh(0.7978845608028654 * h * (1.0 + 0.044715 * h * h)))
    return g @ w_proj + b_proj.reshape(1, -1)


if __name__ == "__main__":
    # GPT MLP at a small config: batch=2, seq=8, n_embd=32, hidden=4*n_embd=128,
    # bias=True, dropout=0.0 (eval semantics).
    B, T, n_embd = 2, 8, 32
    hidden = 4 * n_embd

    key = jax.random.PRNGKey(0)
    k_x, k_wfc, k_bfc, k_wproj, k_bproj = jax.random.split(key, 5)

    x = jax.random.normal(k_x, (B, T, n_embd), dtype=jnp.float32)
    w_fc = jax.random.uniform(k_wfc, (n_embd, hidden), jnp.float32, -1.0, 1.0) / math.sqrt(n_embd)
    b_fc = jax.random.uniform(k_bfc, (1, hidden), jnp.float32, -1.0, 1.0) / math.sqrt(n_embd)
    w_proj = jax.random.uniform(k_wproj, (hidden, n_embd), jnp.float32, -1.0, 1.0) / math.sqrt(hidden)
    b_proj = jax.random.uniform(k_bproj, (1, n_embd), jnp.float32, -1.0, 1.0) / math.sqrt(hidden)

    # One-time weight prep (padding + bf16 cast hoisted out of the call path).
    params = prepare_mlp_params(w_fc, b_fc, w_proj, b_proj)

    x2d = x.reshape(B * T, n_embd)
    out_f32 = mlp_pallas(x2d, params)                            # f32 out, fused accumulator
    out_bf16 = mlp_pallas(x2d, params, out_dtype=jnp.bfloat16)   # bf16 out, f32 scratch acc
    jax.block_until_ready((out_f32, out_bf16))

    out = out_f32.reshape(B, T, n_embd)
    assert out.shape == (B, T, n_embd)

    compute_dtype = jnp.float32 if params["generation"] == "v5e" else jnp.bfloat16
    ref = _reference_mlp(x2d, w_fc, b_fc, w_proj, b_proj, compute_dtype)
    ref_f32 = _reference_mlp_f32(x2d, w_fc, b_fc, w_proj, b_proj)

    tol = 2e-3 if compute_dtype == jnp.float32 else 2e-2
    assert jnp.allclose(out_f32, ref, atol=tol, rtol=tol), "mismatch vs matched reference"
    assert jnp.allclose(out_bf16.astype(jnp.float32), ref, atol=3e-2, rtol=3e-2), \
        "bf16-output mismatch vs matched reference"
    assert jnp.allclose(out_f32, ref_f32, atol=6e-2, rtol=6e-2), \
        "mismatch vs original f32 semantics"

    print("KERNEL_OK")
</pallas_src>

<mosaic_0001>
module attributes {stable_mosaic.version = 11 : i64} {
  func.func @kernel(%arg0: i32, %arg1: i32, %arg2: memref<16x256xbf16, #tpu.memory_space<vmem>>, %arg3: memref<256x256xbf16, #tpu.memory_space<vmem>>, %arg4: memref<1x256xf32, #tpu.memory_space<vmem>>, %arg5: memref<256x256xbf16, #tpu.memory_space<vmem>>, %arg6: memref<1x256xf32, #tpu.memory_space<vmem>>, %arg7: memref<16x256xf32, #tpu.memory_space<vmem>>) attributes {dimension_semantics = [#tpu.dimension_semantics<parallel>, #tpu.dimension_semantics<arbitrary>], iteration_bounds = array<i64: 1, 1>, scalar_prefetch = 0 : i64, scratch_operands = 0 : i64, tpu.core_type = #tpu.core_type<tc>, window_params = [{transform_indices = @transform_0, window_bounds = array<i64: 16, 256>}, {transform_indices = @transform_1, window_bounds = array<i64: 256, 256>}, {transform_indices = @transform_2, window_bounds = array<i64: 1, 256>}, {transform_indices = @transform_3, window_bounds = array<i64: 256, 256>}, {pipeline_mode = #tpu.pipeline_mode<synchronous>, transform_indices = @transform_4, window_bounds = array<i64: 1, 256>}, {transform_indices = @transform_5, window_bounds = array<i64: 16, 256>}]} {
    %c0_i32 = arith.constant 0 : i32
    %0 = arith.cmpi eq, %arg1, %c0_i32 : i32
    %1 = arith.extui %0 : i1 to i32
    %c0_i32_0 = arith.constant 0 : i32
    %2 = arith.cmpi ne, %1, %c0_i32_0 : i32
    scf.if %2 {
      %c0_18 = arith.constant 0 : index
      %c0_19 = arith.constant 0 : index
      %29 = vector.load %arg6[%c0_18, %c0_19] : memref<1x256xf32, #tpu.memory_space<vmem>>, vector<1x256xf32>
      %30 = vector.shape_cast %29 : vector<1x256xf32> to vector<1x256xf32>
      %31 = vector.broadcast %30 : vector<1x256xf32> to vector<16x256xf32>
      %c0_20 = arith.constant 0 : index
      %c0_21 = arith.constant 0 : index
      %32 = vector.load %arg7[%c0_20, %c0_21] : memref<16x256xf32, #tpu.memory_space<vmem>>, vector<16x256xf32>
      tpu.vector_store %arg7[%c0_20, %c0_21], %31 {strides = array<i32>} : memref<16x256xf32, #tpu.memory_space<vmem>>, vector<16x256xf32>,
    } else {
    }
    %c0 = arith.constant 0 : index
    %c0_1 = arith.constant 0 : index
    %3 = vector.load %arg2[%c0, %c0_1] : memref<16x256xbf16, #tpu.memory_space<vmem>>, vector<16x256xbf16>
    %c0_2 = arith.constant 0 : index
    %c0_3 = arith.constant 0 : index
    %4 = vector.load %arg3[%c0_2, %c0_3] : memref<256x256xbf16, #tpu.memory_space<vmem>>, vector<256x256xbf16>
    %cst = arith.constant dense<0.000000e+00> : vector<16x256xf32>
    %5 = tpu.matmul %3, %4, %cst {dimension_numbers = #tpu.dot_dimension_numbers<[1], [0], [0], [1], [0, 0, 1, 1], [], []>} : vector<16x256xbf16>, vector<256x256xbf16>, vector<16x256xf32> -> vector<16x256xf32>
    %c0_4 = arith.constant 0 : index
    %c0_5 = arith.constant 0 : index
    %6 = vector.load %arg4[%c0_4, %c0_5] : memref<1x256xf32, #tpu.memory_space<vmem>>, vector<1x256xf32>
    %7 = vector.broadcast %6 : vector<1x256xf32> to vector<16x256xf32>
    %8 = arith.addf %5, %7 : vector<16x256xf32>
    %9 = arith.truncf %8 : vector<16x256xf32> to vector<16x256xbf16>
    %cst_6 = arith.constant 5.000000e-01 : bf16
    %10 = vector.broadcast %cst_6 : bf16 to vector<16x256xbf16>
    %11 = arith.mulf %10, %9 : vector<16x256xbf16>
    %cst_7 = arith.constant 7.968750e-01 : bf16
    %12 = vector.broadcast %cst_7 : bf16 to vector<16x256xbf16>
    %13 = arith.mulf %12, %9 : vector<16x256xbf16>
    %cst_8 = arith.constant 4.467770e-02 : bf16
    %14 = vector.broadcast %cst_8 : bf16 to vector<16x256xbf16>
    %15 = arith.mulf %14, %9 : vector<16x256xbf16>
    %16 = arith.mulf %15, %9 : vector<16x256xbf16>
    %cst_9 = arith.constant 1.000000e+00 : bf16
    %17 = vector.broadcast %cst_9 : bf16 to vector<16x256xbf16>
    %18 = arith.addf %17, %16 : vector<16x256xbf16>
    %19 = arith.mulf %13, %18 : vector<16x256xbf16>
    %20 = math.tanh %19 : vector<16x256xbf16>
    %cst_10 = arith.constant 1.000000e+00 : bf16
    %21 = vector.broadcast %cst_10 : bf16 to vector<16x256xbf16>
    %22 = arith.addf %21, %20 : vector<16x256xbf16>
    %23 = arith.mulf %11, %22 : vector<16x256xbf16>
    %c0_11 = arith.constant 0 : index
    %c0_12 = arith.constant 0 : index
    %24 = vector.load %arg7[%c0_11, %c0_12] : memref<16x256xf32, #tpu.memory_space<vmem>>, vector<16x256xf32>
    %c0_13 = arith.constant 0 : index
    %c0_14 = arith.constant 0 : index
    %25 = vector.load %arg5[%c0_13, %c0_14] : memref<256x256xbf16, #tpu.memory_space<vmem>>, vector<256x256xbf16>
    %cst_15 = arith.constant dense<0.000000e+00> : vector<16x256xf32>
    %26 = tpu.matmul %23, %25, %cst_15 {dimension_numbers = #tpu.dot_dimension_numbers<[1], [0], [0], [1], [0, 0, 1, 1], [], []>} : vector<16x256xbf16>, vector<256x256xbf16>, vector<16x256xf32> -> vector<16x256xf32>
    %27 = arith.addf %24, %26 : vector<16x256xf32>
    %c0_16 = arith.constant 0 : index
    %c0_17 = arith.constant 0 : index
    %28 = vector.load %arg7[%c0_16, %c0_17] : memref<16x256xf32, #tpu.memory_space<vmem>>, vector<16x256xf32>
    tpu.vector_store %arg7[%c0_16, %c0_17], %27 {strides = array<i32>} : memref<16x256xf32, #tpu.memory_space<vmem>>, vector<16x256xf32>,
    return
  }
  func.func @transform_0(%arg0: i32, %arg1: i32) -> (i32, i32) {
    %c0_i32 = arith.constant 0 : i32
    %c0_i32_0 = arith.constant 0 : i32
    return %arg0, %c0_i32 : i32, i32
  }
  func.func @transform_1(%arg0: i32, %arg1: i32) -> (i32, i32) {
    %c0_i32 = arith.constant 0 : i32
    %c0_i32_0 = arith.constant 0 : i32
    return %c0_i32, %arg1 : i32, i32
  }
  func.func @transform_2(%arg0: i32, %arg1: i32) -> (i32, i32) {
    %c0_i32 = arith.constant 0 : i32
    %c0_i32_0 = arith.constant 0 : i32
    return %c0_i32, %arg1 : i32, i32
  }
  func.func @transform_3(%arg0: i32, %arg1: i32) -> (i32, i32) {
    %c0_i32 = arith.constant 0 : i32
    %c0_i32_0 = arith.constant 0 : i32
    return %arg1, %c0_i32 : i32, i32
  }
  func.func @transform_4(%arg0: i32, %arg1: i32) -> (i32, i32) {
    %c0_i32 = arith.constant 0 : i32
    %c0_i32_0 = arith.constant 0 : i32
    %c0_i32_1 = arith.constant 0 : i32
    return %c0_i32, %c0_i32_0 : i32, i32
  }
  func.func @transform_5(%arg0: i32, %arg1: i32) -> (i32, i32) {
    %c0_i32 = arith.constant 0 : i32
    %c0_i32_0 = arith.constant 0 : i32
    return %arg0, %c0_i32 : i32, i32
  }
}

</mosaic_0001>

<llo_original>
// kernel: tpu_custom_call.1
$region0: #{tpu_custom_call.1}
  #allocation0 [shape = 'u32[]', space=smem, size = 0x4, offset = 0x4, fixed_abs, tag = 'smem constant byte address 0x4 - core index']
  #allocation1 [shape = 'u32[144,128]{1,0:T(1,128)}', space=vmem, size = 0x12000, scoped, tag = 'internal scratch']
  %s0 = inlined_call_operand.hbm [shape: bf16[16,256], index: 0, kind: input, shape index: {}]
  %s1 = inlined_call_operand.hbm [shape: bf16[256,256], index: 1, kind: input, shape index: {}]
  %s2 = inlined_call_operand.vmem [shape: f32[1,256], index: 2, kind: input, shape index: {}]
  %s3 = inlined_call_operand.hbm [shape: bf16[256,256], index: 3, kind: input, shape index: {}]
  %s4 = inlined_call_operand.vmem [shape: f32[1,256], index: 4, kind: input, shape index: {}]
  %s5 = inlined_call_operand.hbm [shape: f32[16,256], index: 5, kind: output, shape index: {}]
  %s6 = sld [smem:[#allocation0]]
  $region46: #{tpu_custom_call.1} parent=0
    _
  %s8 = ssub.s32 1, %s6
  %s9 = scalar_select 0, %s8, %s6
  $region1: #{tpu_custom_call.1} parent=0
    #allocation2 [shape = 'u8[8192]{0}', space=vmem, size = 0x2000, scoped, tag = 'input window, operand 0, single buffered']
    #allocation3 [shape = 's32[1]{0}', space=sflag, size = 0x4, scoped, tag = 'scoped memory for tpu_custom_call.1']
    #allocation4 [shape = 's32[1]{0}', space=sflag, size = 0x4, scoped, tag = 'scoped memory for tpu_custom_call.1']
    #allocation5 [shape = 'u8[131072]{0}', space=vmem, size = 0x20000, scoped, tag = 'input window, operand 1, single buffered']
    #allocation6 [shape = 's32[1]{0}', space=sflag, size = 0x4, scoped, tag = 'scoped memory for tpu_custom_call.1']
    #allocation7 [shape = 'u8[131072]{0}', space=vmem, size = 0x20000, scoped, tag = 'input window, operand 3, single buffered']
    #allocation8 [shape = 'u8[16384]{0}', space=vmem, size = 0x4000, scoped, tag = 'output window, operand 0, single buffered']
    %10 = vsyncpa [#allocation3], 0
    %11 = vsyncpa [#allocation6], 0
    %12 = vsyncpa [#allocation4], 0
    // Predicated region
    $region2: #{tpu_custom_call.1} parent=1 // pred_check
      _
    $region3: #{tpu_custom_call.1} parent=1 // pred_check_branch
      %14 = sbr.rel (0) target = $region5
    $region4: #{tpu_custom_call.1} parent=1 // pred_region
      %s16 = ssub.s32 256, 256
      %17 = vsyncadd [#allocation3], %s16
      %s18 = sshll.u32 [#allocation2], 4
      %s19 = int_to_ptr.vmem [resolvable:$true] %s18
      %24 = dma.hbm_to_vmem [thread:$0]  %s0, 256, %s19, [#allocation3], 128, 128, 8
    $region5: #{tpu_custom_call.1} parent=1 // pred_fallthru
      _
    // Predicated region
    $region6: #{tpu_custom_call.1} parent=1 // pred_check
      _
    $region7: #{tpu_custom_call.1} parent=1 // pred_check_branch
      %26 = sbr.rel (0) target = $region9
    $region8: #{tpu_custom_call.1} parent=1 // pred_region
      %s28 = ssub.s32 4096, 4096
      %29 = vsyncadd [#allocation6], %s28
      %s30 = sshll.u32 [#allocation5], 4
      %s31 = int_to_ptr.vmem [resolvable:$true] %s30
      %36 = dma.hbm_to_vmem [thread:$0]  %s1, 4096, %s31, [#allocation6], 128, 128, 8
    $region9: #{tpu_custom_call.1} parent=1 // pred_fallthru
      _
    // Predicated region
    $region10: #{tpu_custom_call.1} parent=1 // pred_check
      _
    $region11: #{tpu_custom_call.1} parent=1 // pred_check_branch
      %38 = sbr.rel (0) target = $region13
    $region12: #{tpu_custom_call.1} parent=1 // pred_region
      _
    $region13: #{tpu_custom_call.1} parent=1 // pred_fallthru
      _
    // Predicated region
    $region14: #{tpu_custom_call.1} parent=1 // pred_check
      _
    $region15: #{tpu_custom_call.1} parent=1 // pred_check_branch
      %40 = sbr.rel (0) target = $region17
    $region16: #{tpu_custom_call.1} parent=1 // pred_region
      %s42 = ssub.s32 4096, 4096
      %43 = vsyncadd [#allocation6], %s42
      %s44 = sshll.u32 [#allocation7], 4
      %s45 = int_to_ptr.vmem [resolvable:$true] %s44
      %50 = dma.hbm_to_vmem [thread:$0]  %s3, 4096, %s45, [#allocation6], 128, 128, 8
    $region17: #{tpu_custom_call.1} parent=1 // pred_fallthru
      _
    // Predicated region
    $region18: #{tpu_custom_call.1} parent=1 // pred_check
      _
    $region19: #{tpu_custom_call.1} parent=1 // pred_check_branch
      %52 = sbr.rel (0) target = $region21
    $region20: #{tpu_custom_call.1} parent=1 // pred_region
      _
    $region21: #{tpu_custom_call.1} parent=1 // pred_fallthru
      _
    // Predicated region
    $region22: #{tpu_custom_call.1} parent=1 // pred_check
      _
    $region23: #{tpu_custom_call.1} parent=1 // pred_check_branch
      %54 = sbr.rel (0) target = $region25
    $region24: #{tpu_custom_call.1} parent=1 // pred_region
      %55 = dma.done [#allocation3], 256
    $region25: #{tpu_custom_call.1} parent=1 // pred_fallthru
      _
    // Predicated region
    $region26: #{tpu_custom_call.1} parent=1 // pred_check
      _
    $region27: #{tpu_custom_call.1} parent=1 // pred_check_branch
      %57 = sbr.rel (0) target = $region29
    $region28: #{tpu_custom_call.1} parent=1 // pred_region
      %58 = dma.done [#allocation6], 4096
    $region29: #{tpu_custom_call.1} parent=1 // pred_fallthru
      _
    // Predicated region
    $region30: #{tpu_custom_call.1} parent=1 // pred_check
      _
    $region31: #{tpu_custom_call.1} parent=1 // pred_check_branch
      %60 = sbr.rel (0) target = $region33
    $region32: #{tpu_custom_call.1} parent=1 // pred_region
      %61 = dma.done [#allocation6], 4096
    $region33: #{tpu_custom_call.1} parent=1 // pred_fallthru
      _
    %p66 = scmp.eq.s32.totalorder 0, 0
    // Predicated region
    $region34: #{tpu_custom_call.1} parent=1 // pred_check
      %p67 = pneg %p66
    $region35: #{tpu_custom_call.1} parent=1 // pred_check_branch
      %69 = sbr.rel (%p67) target = $region37
    $region36: #{tpu_custom_call.1} parent=1 // pred_region
      %v70 = vld [vmem:[%s4] sm:$0x3]
      %v72 = vlaneseq
      %v73 = vshrl.u32 %v72, 7
      %v74 = vsub.s32 0, %v73
      %v75 = vrot.slane %v70, %v74
      %v76 = vlaneseq
      %v77 = vshrl.u32 %v76, 7
      %v78 = vsub.s32 1, %v77
      %v79 = vrot.slane %v70, %v78
      %82 = vst [vmem:[#allocation8] sm:$0xff] %v75
      %83 = vst [vmem:[#allocation8 + $0x8] sm:$0xff] %v79
      %84 = vst [vmem:[#allocation8 + $0x10] sm:$0xff] %v75
      %85 = vst [vmem:[#allocation8 + $0x18] sm:$0xff] %v79
    $region37: #{tpu_custom_call.1} parent=1 // pred_fallthru
      _
    %v86 = vld [vmem:[#allocation2] sm:$0xff]
    %v87 = vld [vmem:[#allocation2 + $0x8] sm:$0xff]
    %v88 = vld [vmem:[#allocation5] sm:$0xff]
    %v89 = vld [vmem:[#allocation5 + $0x8] sm:$0xff]
    %v90 = vld [vmem:[#allocation5 + $0x10] sm:$0xff]
    %v91 = vld [vmem:[#allocation5 + $0x18] sm:$0xff]
    %v92 = vld [vmem:[#allocation5 + $0x20] sm:$0xff]
    %v93 = vld [vmem:[#allocation5 + $0x28] sm:$0xff]
    %v94 = vld [vmem:[#allocation5 + $0x30] sm:$0xff]
    %v95 = vld [vmem:[#allocation5 + $0x38] sm:$0xff]
    %v96 = vld [vmem:[#allocation5 + $0x40] sm:$0xff]
    %v97 = vld [vmem:[#allocation5 + $0x48] sm:$0xff]
    %v98 = vld [vmem:[#allocation5 + $0x50] sm:$0xff]
    %v99 = vld [vmem:[#allocation5 + $0x58] sm:$0xff]
    %v100 = vld [vmem:[#allocation5 + $0x60] sm:$0xff]
    %v101 = vld [vmem:[#allocation5 + $0x68] sm:$0xff]
    %v102 = vld [vmem:[#allocation5 + $0x70] sm:$0xff]
    %v103 = vld [vmem:[#allocation5 + $0x78] sm:$0xff]
    %v104 = vld [vmem:[#allocation5 + $0x80] sm:$0xff]
    %v105 = vld [vmem:[#allocation5 + $0x88] sm:$0xff]
    %v106 = vld [vmem:[#allocation5 + $0x90] sm:$0xff]
    %v107 = vld [vmem:[#allocation5 + $0x98] sm:$0xff]
    %v108 = vld [vmem:[#allocation5 + $0xa0] sm:$0xff]
    %v109 = vld [vmem:[#allocation5 + $0xa8] sm:$0xff]
    %v110 = vld [vmem:[#allocation5 + $0xb0] sm:$0xff]
    %v111 = vld [vmem:[#allocation5 + $0xb8] sm:$0xff]
    %v112 = vld [vmem:[#allocation5 + $0xc0] sm:$0xff]
    %v113 = vld [vmem:[#allocation5 + $0xc8] sm:$0xff]
    %v114 = vld [vmem:[#allocation5 + $0xd0] sm:$0xff]
    %v115 = vld [vmem:[#allocation5 + $0xd8] sm:$0xff]
    %v116 = vld [vmem:[#allocation5 + $0xe0] sm:$0xff]
    %v117 = vld [vmem:[#allocation5 + $0xe8] sm:$0xff]
    %v118 = vld [vmem:[#allocation5 + $0xf0] sm:$0xff]
    %v119 = vld [vmem:[#allocation5 + $0xf8] sm:$0xff]
    %v120 = vld [vmem:[%s2] sm:$0x3]
    %v122 = vlaneseq
    %v123 = vshrl.u32 %v122, 7
    %v124 = vsub.s32 0, %v123
    %v125 = vrot.slane %v120, %v124
    %v126 = vlaneseq
    %v127 = vshrl.u32 %v126, 7
    %v128 = vsub.s32 1, %v127
    %v129 = vrot.slane %v120, %v128
    %v134 = vunpack.c.l.b16 %v86
    %v135 = vunpack.c.h.b16 %v86
    %v136 = vunpack.c.l.b16 %v87
    %v137 = vunpack.c.h.b16 %v87
    %v138 = vpack.c.b16 %v136, %v134
    %v139 = vpack.c.b16 %v137, %v135
    %v174 = vunpack.c.l.b16 %v88
    %v175 = vunpack.c.h.b16 %v88
    %v176 = vunpack.c.l.b16 %v89
    %v177 = vunpack.c.h.b16 %v89
    %v178 = vunpack.c.l.b16 %v90
    %v179 = vunpack.c.h.b16 %v90
    %v180 = vunpack.c.l.b16 %v91
    %v181 = vunpack.c.h.b16 %v91
    %v182 = vunpack.c.l.b16 %v92
    %v183 = vunpack.c.h.b16 %v92
    %v184 = vunpack.c.l.b16 %v93
    %v185 = vunpack.c.h.b16 %v93
    %v186 = vunpack.c.l.b16 %v94
    %v187 = vunpack.c.h.b16 %v94
    %v188 = vunpack.c.l.b16 %v95
    %v189 = vunpack.c.h.b16 %v95
    %v190 = vunpack.c.l.b16 %v96
    %v191 = vunpack.c.h.b16 %v96
    %v192 = vunpack.c.l.b16 %v97
    %v193 = vunpack.c.h.b16 %v97
    %v194 = vunpack.c.l.b16 %v98
    %v195 = vunpack.c.h.b16 %v98
    %v196 = vunpack.c.l.b16 %v99
    %v197 = vunpack.c.h.b16 %v99
    %v198 = vunpack.c.l.b16 %v100
    %v199 = vunpack.c.h.b16 %v100
    %v200 = vunpack.c.l.b16 %v101
    %v201 = vunpack.c.h.b16 %v101
    %v202 = vunpack.c.l.b16 %v102
    %v203 = vunpack.c.h.b16 %v102
    %v204 = vunpack.c.l.b16 %v103
    %v205 = vunpack.c.h.b16 %v103
    %v206 = vunpack.c.l.b16 %v104
    %v207 = vunpack.c.h.b16 %v104
    %v208 = vunpack.c.l.b16 %v105
    %v209 = vunpack.c.h.b16 %v105
    %v210 = vunpack.c.l.b16 %v106
    %v211 = vunpack.c.h.b16 %v106
    %v212 = vunpack.c.l.b16 %v107
    %v213 = vunpack.c.h.b16 %v107
    %v214 = vunpack.c.l.b16 %v108
    %v215 = vunpack.c.h.b16 %v108
    %v216 = vunpack.c.l.b16 %v109
    %v217 = vunpack.c.h.b16 %v109
    %v218 = vunpack.c.l.b16 %v110
    %v219 = vunpack.c.h.b16 %v110
    %v220 = vunpack.c.l.b16 %v111
    %v221 = vunpack.c.h.b16 %v111
    %v222 = vunpack.c.l.b16 %v112
    %v223 = vunpack.c.h.b16 %v112
    %v224 = vunpack.c.l.b16 %v113
    %v225 = vunpack.c.h.b16 %v113
    %v226 = vunpack.c.l.b16 %v114
    %v227 = vunpack.c.h.b16 %v114
    %v228 = vunpack.c.l.b16 %v115
    %v229 = vunpack.c.h.b16 %v115
    %v230 = vunpack.c.l.b16 %v116
    %v231 = vunpack.c.h.b16 %v116
    %v232 = vunpack.c.l.b16 %v117
    %v233 = vunpack.c.h.b16 %v117
    %v234 = vunpack.c.l.b16 %v118
    %v235 = vunpack.c.h.b16 %v118
    %v236 = vunpack.c.l.b16 %v119
    %v237 = vunpack.c.h.b16 %v119
    %v238 = vpack.c.b16 %v176, %v174
    %v239 = vpack.c.b16 %v177, %v175
    %v240 = vpack.c.b16 %v180, %v178
    %v241 = vpack.c.b16 %v181, %v179
    %v242 = vpack.c.b16 %v184, %v182
    %v243 = vpack.c.b16 %v185, %v183
    %v244 = vpack.c.b16 %v188, %v186
    %v245 = vpack.c.b16 %v189, %v187
    %v246 = vpack.c.b16 %v192, %v190
    %v247 = vpack.c.b16 %v193, %v191
    %v248 = vpack.c.b16 %v196, %v194
    %v249 = vpack.c.b16 %v197, %v195
    %v250 = vpack.c.b16 %v200, %v198
    %v251 = vpack.c.b16 %v201, %v199
    %v252 = vpack.c.b16 %v204, %v202
    %v253 = vpack.c.b16 %v205, %v203
    %v254 = vpack.c.b16 %v208, %v206
    %v255 = vpack.c.b16 %v209, %v207
    %v256 = vpack.c.b16 %v212, %v210
    %v257 = vpack.c.b16 %v213, %v211
    %v258 = vpack.c.b16 %v216, %v214
    %v259 = vpack.c.b16 %v217, %v215
    %v260 = vpack.c.b16 %v220, %v218
    %v261 = vpack.c.b16 %v221, %v219
    %v262 = vpack.c.b16 %v224, %v222
    %v263 = vpack.c.b16 %v225, %v223
    %v264 = vpack.c.b16 %v228, %v226
    %v265 = vpack.c.b16 %v229, %v227
    %v266 = vpack.c.b16 %v232, %v230
    %v267 = vpack.c.b16 %v233, %v231
    %v268 = vpack.c.b16 %v236, %v234
    %v269 = vpack.c.b16 %v237, %v235
    %302 = vmatprep.subr.bf16.mxu0 %v239
    %303 = vmatpush1.bf16.msra.mxu0 %v238
    %304 = vmatprep.subr.bf16.mxu0 %v241
    %305 = vmatpush1.bf16.msra.mxu0 %v240
    %306 = vmatprep.subr.bf16.mxu0 %v243
    %307 = vmatpush1.bf16.msra.mxu0 %v242
    %308 = vmatprep.subr.bf16.mxu0 %v245
    %309 = vmatpush1.bf16.msra.mxu0 %v244
    %310 = vmatprep.subr.bf16.mxu0 %v247
    %311 = vmatpush1.bf16.msra.mxu0 %v246
    %312 = vmatprep.subr.bf16.mxu0 %v249
    %313 = vmatpush1.bf16.msra.mxu0 %v248
    %314 = vmatprep.subr.bf16.mxu0 %v251
    %315 = vmatpush1.bf16.msra.mxu0 %v250
    %316 = vmatprep.subr.bf16.mxu0 %v253
    %317 = vmatpush1.bf16.msra.mxu0 %v252
    %318 = vmatprep.subr.bf16.mxu0 %v255
    %319 = vmatpush1.bf16.msra.mxu0 %v254
    %320 = vmatprep.subr.bf16.mxu0 %v257
    %321 = vmatpush1.bf16.msra.mxu0 %v256
    %322 = vmatprep.subr.bf16.mxu0 %v259
    %323 = vmatpush1.bf16.msra.mxu0 %v258
    %324 = vmatprep.subr.bf16.mxu0 %v261
    %325 = vmatpush1.bf16.msra.mxu0 %v260
    %326 = vmatprep.subr.bf16.mxu0 %v263
    %327 = vmatpush1.bf16.msra.mxu0 %v262
    %328 = vmatprep.subr.bf16.mxu0 %v265
    %329 = vmatpush1.bf16.msra.mxu0 %v264
    %330 = vmatprep.subr.bf16.mxu0 %v267
    %331 = vmatpush1.bf16.msra.mxu0 %v266
    %332 = vmatprep.subr.bf16.mxu0 %v269
    %333 = vmatpush1.bf16.msra.mxu0 %v268
    %334 = vmatprep.mubr.bf16.mxu0 %v139
    %335 = vmatmul.mubr.bf16.gmra.mrb[0].mxu0 %v138
    %v336 = vpop.f32.mrb[0].mxu0
    %v337 = vadd.f32 %v125, %v336
    %v338 = vpop.f32.mrb[0].mxu0
    %v339 = vadd.f32 %v129, %v338
    %v340 = vpop.f32.mrb[0].mxu0
    %v341 = vadd.f32 %v125, %v340
    %v342 = vpop.f32.mrb[0].mxu0
    %v343 = vadd.f32 %v129, %v342
    %344 = vdwg.mxu0
    %v345 = vpack.c.bf16 %v341, %v337
    %v346 = vpack.c.bf16 %v343, %v339
    %v347 = vmul.bf16 %v345, 1056980736
    %v348 = vmul.bf16 %v346, 1056980736
    %v349 = vmul.bf16 %v345, 1061961548
    %v350 = vmul.bf16 %v346, 1061961548
    %v351 = vmul.bf16 %v345, 1027030327
    %v352 = vmul.bf16 %v346, 1027030327
    %v353 = vmul.bf16 %v351, %v345
    %v354 = vmul.bf16 %v352, %v346
    %v355 = vadd.bf16 %v353, 1065369472
    %v356 = vadd.bf16 %v354, 1065369472
    %v357 = vmul.bf16 %v349, %v355
    %v358 = vmul.bf16 %v350, %v356
    %v359 = vtanh.bf16.pop %v357
    %v360 = vtanh.bf16.pop %v358
    %v361 = vadd.bf16 %v359, 1065369472
    %v362 = vadd.bf16 %v360, 1065369472
    %v363 = vmul.bf16 %v347, %v361
    %v364 = vmul.bf16 %v348, %v362
    %v365 = vld [vmem:[#allocation8] sm:$0xff]
    %v366 = vld [vmem:[#allocation8 + $0x8] sm:$0xff]
    %v367 = vld [vmem:[#allocation8 + $0x10] sm:$0xff]
    %v368 = vld [vmem:[#allocation8 + $0x18] sm:$0xff]
    %v369 = vld [vmem:[#allocation7] sm:$0xff]
    %v370 = vld [vmem:[#allocation7 + $0x8] sm:$0xff]
    %v371 = vld [vmem:[#allocation7 + $0x10] sm:$0xff]
    %v372 = vld [vmem:[#allocation7 + $0x18] sm:$0xff]
    %v373 = vld [vmem:[#allocation7 + $0x20] sm:$0xff]
    %v374 = vld [vmem:[#allocation7 + $0x28] sm:$0xff]
    %v375 = vld [vmem:[#allocation7 + $0x30] sm:$0xff]
    %v376 = vld [vmem:[#allocation7 + $0x38] sm:$0xff]
    %v377 = vld [vmem:[#allocation7 + $0x40] sm:$0xff]
    %v378 = vld [vmem:[#allocation7 + $0x48] sm:$0xff]
    %v379 = vld [vmem:[#allocation7 + $0x50] sm:$0xff]
    %v380 = vld [vmem:[#allocation7 + $0x58] sm:$0xff]
    %v381 = vld [vmem:[#allocation7 + $0x60] sm:$0xff]
    %v382 = vld [vmem:[#allocation7 + $0x68] sm:$0xff]
    %v383 = vld [vmem:[#allocation7 + $0x70] sm:$0xff]
    %v384 = vld [vmem:[#allocation7 + $0x78] sm:$0xff]
    %v385 = vld [vmem:[#allocation7 + $0x80] sm:$0xff]
    %v386 = vld [vmem:[#allocation7 + $0x88] sm:$0xff]
    %v387 = vld [vmem:[#allocation7 + $0x90] sm:$0xff]
    %v388 = vld [vmem:[#allocation7 + $0x98] sm:$0xff]
    %v389 = vld [vmem:[#allocation7 + $0xa0] sm:$0xff]
    %v390 = vld [vmem:[#allocation7 + $0xa8] sm:$0xff]
    %v391 = vld [vmem:[#allocation7 + $0xb0] sm:$0xff]
    %v392 = vld [vmem:[#allocation7 + $0xb8] sm:$0xff]
    %v393 = vld [vmem:[#allocation7 + $0xc0] sm:$0xff]
    %v394 = vld [vmem:[#allocation7 + $0xc8] sm:$0xff]
    %v395 = vld [vmem:[#allocation7 + $0xd0] sm:$0xff]
    %v396 = vld [vmem:[#allocation7 + $0xd8] sm:$0xff]
    %v397 = vld [vmem:[#allocation7 + $0xe0] sm:$0xff]
    %v398 = vld [vmem:[#allocation7 + $0xe8] sm:$0xff]
    %v399 = vld [vmem:[#allocation7 + $0xf0] sm:$0xff]
    %v400 = vld [vmem:[#allocation7 + $0xf8] sm:$0xff]
    %v433 = vunpack.c.l.b16 %v369
    %v434 = vunpack.c.h.b16 %v369
    %v435 = vunpack.c.l.b16 %v370
    %v436 = vunpack.c.h.b16 %v370
    %v437 = vunpack.c.l.b16 %v371
    %v438 = vunpack.c.h.b16 %v371
    %v439 = vunpack.c.l.b16 %v372
    %v440 = vunpack.c.h.b16 %v372
    %v441 = vunpack.c.l.b16 %v373
    %v442 = vunpack.c.h.b16 %v373
    %v443 = vunpack.c.l.b16 %v374
    %v444 = vunpack.c.h.b16 %v374
    %v445 = vunpack.c.l.b16 %v375
    %v446 = vunpack.c.h.b16 %v375
    %v447 = vunpack.c.l.b16 %v376
    %v448 = vunpack.c.h.b16 %v376
    %v449 = vunpack.c.l.b16 %v377
    %v450 = vunpack.c.h.b16 %v377
    %v451 = vunpack.c.l.b16 %v378
    %v452 = vunpack.c.h.b16 %v378
    %v453 = vunpack.c.l.b16 %v379
    %v454 = vunpack.c.h.b16 %v379
    %v455 = vunpack.c.l.b16 %v380
    %v456 = vunpack.c.h.b16 %v380
    %v457 = vunpack.c.l.b16 %v381
    %v458 = vunpack.c.h.b16 %v381
    %v459 = vunpack.c.l.b16 %v382
    %v460 = vunpack.c.h.b16 %v382
    %v461 = vunpack.c.l.b16 %v383
    %v462 = vunpack.c.h.b16 %v383
    %v463 = vunpack.c.l.b16 %v384
    %v464 = vunpack.c.h.b16 %v384
    %v465 = vunpack.c.l.b16 %v385
    %v466 = vunpack.c.h.b16 %v385
    %v467 = vunpack.c.l.b16 %v386
    %v468 = vunpack.c.h.b16 %v386
    %v469 = vunpack.c.l.b16 %v387
    %v470 = vunpack.c.h.b16 %v387
    %v471 = vunpack.c.l.b16 %v388
    %v472 = vunpack.c.h.b16 %v388
    %v473 = vunpack.c.l.b16 %v389
    %v474 = vunpack.c.h.b16 %v389
    %v475 = vunpack.c.l.b16 %v390
    %v476 = vunpack.c.h.b16 %v390
    %v477 = vunpack.c.l.b16 %v391
    %v478 = vunpack.c.h.b16 %v391
    %v479 = vunpack.c.l.b16 %v392
    %v480 = vunpack.c.h.b16 %v392
    %v481 = vunpack.c.l.b16 %v393
    %v482 = vunpack.c.h.b16 %v393
    %v483 = vunpack.c.l.b16 %v394
    %v484 = vunpack.c.h.b16 %v394
    %v485 = vunpack.c.l.b16 %v395
    %v486 = vunpack.c.h.b16 %v395
    %v487 = vunpack.c.l.b16 %v396
    %v488 = vunpack.c.h.b16 %v396
    %v489 = vunpack.c.l.b16 %v397
    %v490 = vunpack.c.h.b16 %v397
    %v491 = vunpack.c.l.b16 %v398
    %v492 = vunpack.c.h.b16 %v398
    %v493 = vunpack.c.l.b16 %v399
    %v494 = vunpack.c.h.b16 %v399
    %v495 = vunpack.c.l.b16 %v400
    %v496 = vunpack.c.h.b16 %v400
    %v497 = vpack.c.b16 %v435, %v433
    %v498 = vpack.c.b16 %v436, %v434
    %v499 = vpack.c.b16 %v439, %v437
    %v500 = vpack.c.b16 %v440, %v438
    %v501 = vpack.c.b16 %v443, %v441
    %v502 = vpack.c.b16 %v444, %v442
    %v503 = vpack.c.b16 %v447, %v445
    %v504 = vpack.c.b16 %v448, %v446
    %v505 = vpack.c.b16 %v451, %v449
    %v506 = vpack.c.b16 %v452, %v450
    %v507 = vpack.c.b16 %v455, %v453
    %v508 = vpack.c.b16 %v456, %v454
    %v509 = vpack.c.b16 %v459, %v457
    %v510 = vpack.c.b16 %v460, %v458
    %v511 = vpack.c.b16 %v463, %v461
    %v512 = vpack.c.b16 %v464, %v462
    %v513 = vpack.c.b16 %v467, %v465
    %v514 = vpack.c.b16 %v468, %v466
    %v515 = vpack.c.b16 %v471, %v469
    %v516 = vpack.c.b16 %v472, %v470
    %v517 = vpack.c.b16 %v475, %v473
    %v518 = vpack.c.b16 %v476, %v474
    %v519 = vpack.c.b16 %v479, %v477
    %v520 = vpack.c.b16 %v480, %v478
    %v521 = vpack.c.b16 %v483, %v481
    %v522 = vpack.c.b16 %v484, %v482
    %v523 = vpack.c.b16 %v487, %v485
    %v524 = vpack.c.b16 %v488, %v486
    %v525 = vpack.c.b16 %v491, %v489
    %v526 = vpack.c.b16 %v492, %v490
    %v527 = vpack.c.b16 %v495, %v493
    %v528 = vpack.c.b16 %v496, %v494
    %561 = vmatprep.subr.bf16.mxu0 %v498
    %562 = vmatpush1.bf16.msra.mxu0 %v497
    %563 = vmatprep.subr.bf16.mxu0 %v500
    %564 = vmatpush1.bf16.msra.mxu0 %v499
    %565 = vmatprep.subr.bf16.mxu0 %v502
    %566 = vmatpush1.bf16.msra.mxu0 %v501
    %567 = vmatprep.subr.bf16.mxu0 %v504
    %568 = vmatpush1.bf16.msra.mxu0 %v503
    %569 = vmatprep.subr.bf16.mxu0 %v506
    %570 = vmatpush1.bf16.msra.mxu0 %v505
    %571 = vmatprep.subr.bf16.mxu0 %v508
    %572 = vmatpush1.bf16.msra.mxu0 %v507
    %573 = vmatprep.subr.bf16.mxu0 %v510
    %574 = vmatpush1.bf16.msra.mxu0 %v509
    %575 = vmatprep.subr.bf16.mxu0 %v512
    %576 = vmatpush1.bf16.msra.mxu0 %v511
    %577 = vmatprep.subr.bf16.mxu0 %v514
    %578 = vmatpush1.bf16.msra.mxu0 %v513
    %579 = vmatprep.subr.bf16.mxu0 %v516
    %580 = vmatpush1.bf16.msra.mxu0 %v515
    %581 = vmatprep.subr.bf16.mxu0 %v518
    %582 = vmatpush1.bf16.msra.mxu0 %v517
    %583 = vmatprep.subr.bf16.mxu0 %v520
    %584 = vmatpush1.bf16.msra.mxu0 %v519
    %585 = vmatprep.subr.bf16.mxu0 %v522
    %586 = vmatpush1.bf16.msra.mxu0 %v521
    %587 = vmatprep.subr.bf16.mxu0 %v524
    %588 = vmatpush1.bf16.msra.mxu0 %v523
    %589 = vmatprep.subr.bf16.mxu0 %v526
    %590 = vmatpush1.bf16.msra.mxu0 %v525
    %591 = vmatprep.subr.bf16.mxu0 %v528
    %592 = vmatpush1.bf16.msra.mxu0 %v527
    %593 = vmatprep.mubr.bf16.mxu0 %v364
    %594 = vmatmul.mubr.bf16.gmra.mrb[0].mxu0 %v363
    %v595 = vpop.f32.mrb[0].mxu0
    %v596 = vadd.f32 0.0, %v595
    %v597 = vpop.f32.mrb[0].mxu0
    %v598 = vadd.f32 0.0, %v597
    %v599 = vpop.f32.mrb[0].mxu0
    %v600 = vadd.f32 0.0, %v599
    %v601 = vpop.f32.mrb[0].mxu0
    %v602 = vadd.f32 0.0, %v601
    %603 = vdwg.mxu0
    %v604 = vadd.f32 %v365, %v596
    %v605 = vadd.f32 %v366, %v598
    %v606 = vadd.f32 %v367, %v600
    %v607 = vadd.f32 %v368, %v602
    %608 = vst [vmem:[#allocation8] sm:$0xff] %v604
    %609 = vst [vmem:[#allocation8 + $0x8] sm:$0xff] %v605
    %610 = vst [vmem:[#allocation8 + $0x10] sm:$0xff] %v606
    %611 = vst [vmem:[#allocation8 + $0x18] sm:$0xff] %v607
    // Predicated region
    $region38: #{tpu_custom_call.1} parent=1 // pred_check
      _
    $region39: #{tpu_custom_call.1} parent=1 // pred_check_branch
      %613 = sbr.rel (0) target = $region41
    $region40: #{tpu_custom_call.1} parent=1 // pred_region
      %s615 = ssub.s32 512, 512
      %616 = vsyncadd [#allocation4], %s615
      %s617 = sshll.u32 [#allocation8], 4
      %s618 = int_to_ptr.vmem [resolvable:$true] %s617
      %623 = dma.vmem_to_hbm [thread:$0]  %s618, 512, %s5, [#allocation4], 256, 256, 16
    $region41: #{tpu_custom_call.1} parent=1 // pred_fallthru
      _
    // Predicated region
    $region42: #{tpu_custom_call.1} parent=1 // pred_check
      _
    $region43: #{tpu_custom_call.1} parent=1 // pred_check_branch
      %625 = sbr.rel (0) target = $region45
    $region44: #{tpu_custom_call.1} parent=1 // pred_region
      %626 = dma.done [#allocation4], 512
    $region45: #{tpu_custom_call.1} parent=1 // pred_fallthru
      _
    %627 = vsyncpa [#allocation3], 1
    %628 = vsyncpa [#allocation6], 1
    %629 = vsyncpa [#allocation4], 1

</llo_original>
